<compile_context>
chip_gen: v5e
topology: v5e:2x2
jax: 0.10.0
libtpu: 0.0.40
codegen_flags: <defaults>
</compile_context>

<pallas_src>
import jax
import jax.numpy as jnp
from jax.experimental import pallas as pl
from jax.experimental.pallas import tpu as pltpu

_SHIFT = 23                     # value field lives in bits [23, 31); 255<<23 + (2^23-1) == 2^31-1
_IDX_MASK = (1 << _SHIFT) - 1   # low 23 bits carry (K-1 - k)


def _reduce_max_dim1_kernel(a_ref, vals_ref, idx_ref):
    # a_ref: (b_tile, K, n_tile) uint8 tile already resident in VMEM.
    x = a_ref[...].astype(jnp.int32)                           # in-vreg widen (VPU, hidden under DMA)
    K = x.shape[1]

    # Packed key: high bits = value, low bits = (K-1-k) so that, among equal
    # values, the SMALLEST k wins the max -> first-occurrence argmax.
    k_iota = jax.lax.broadcasted_iota(jnp.int32, x.shape, 1)   # (b_tile, K, n_tile)
    key = (x << _SHIFT) | (jnp.int32(K - 1) - k_iota)

    kmax = jnp.max(key, axis=1)                                # single XLU reduction, (b_tile, n_tile)

    vals_ref[...] = (kmax >> _SHIFT).astype(jnp.uint8)
    idx_ref[...] = jnp.int32(K - 1) - (kmax & jnp.int32(_IDX_MASK))


def _pick_tile(dim, align, max_tile):
    """Largest multiple of `align` dividing `dim`, capped at `max_tile`; else full extent."""
    if dim % align != 0:
        return dim
    t = min(max_tile, dim)
    t -= t % align
    while t > align and dim % t != 0:
        t -= align
    return t if (t > 0 and dim % t == 0) else dim


def reduce_max_along_dim_unsigned_int(a_u8):
    """a_u8: uint8 array of shape (B, K, N). Returns (values uint8[B,N], indices int32[B,N])."""
    B, K, N = a_u8.shape
    assert K <= (_IDX_MASK + 1), "packed-key argmax requires K <= 2^23"
    # TODO(synk): for huge K (does not fit VMEM) add K as a trailing "arbitrary"
    # grid axis with a packed-key scratch accumulator (pl.when init/finalize).

    # Lane-dense tiles: keep full K per block so the reduction stays in-tile,
    # tile N in multiples of 128 (up to 1024 lanes) and B in multiples of 8.
    n_tile = _pick_tile(N, 128, 1024)
    b_tile = _pick_tile(B, 8, 64)
    grid = (B // b_tile, N // n_tile)

    vals, idx = pl.pallas_call(
        _reduce_max_dim1_kernel,
        out_shape=(
            jax.ShapeDtypeStruct((B, N), jnp.uint8),
            jax.ShapeDtypeStruct((B, N), jnp.int32),
        ),
        grid=grid,
        in_specs=[pl.BlockSpec((b_tile, K, n_tile), lambda i, j: (i, 0, j))],
        out_specs=(
            pl.BlockSpec((b_tile, n_tile), lambda i, j: (i, j)),
            pl.BlockSpec((b_tile, n_tile), lambda i, j: (i, j)),
        ),
        compiler_params=pltpu.CompilerParams(
            dimension_semantics=("parallel", "parallel"),
        ),
    )(a_u8)

    # TODO(synk): torch returns int64 indices; TPU vector units have no int64,
    # so indices are returned as int32 (identical values for any realistic K).
    return vals, idx


if __name__ == "__main__":
    key = jax.random.PRNGKey(0)
    # small 3D uint8 input, mirroring the torch-mlir test (tu.randint(3, 4, 5, high=100).to(uint8))
    B, K, N = 3, 4, 5
    a = jax.random.randint(key, (B, K, N), 0, 100, dtype=jnp.int32).astype(jnp.uint8)

    vals, idxs = reduce_max_along_dim_unsigned_int(a)
    vals = jax.block_until_ready(vals)
    idxs = jax.block_until_ready(idxs)

    # reference check in plain JAX
    ref_vals = jnp.max(a, axis=1)
    ref_idxs = jnp.argmax(a.astype(jnp.int32), axis=1).astype(jnp.int32)

    assert vals.dtype == jnp.uint8, vals.dtype
    assert vals.shape == (B, N) and idxs.shape == (B, N)
    assert bool(jnp.all(vals == ref_vals)), "values mismatch"
    assert bool(jnp.all(idxs == ref_idxs)), "indices mismatch"

    print("KERNEL_OK")
</pallas_src>

<mosaic_0001>
module attributes {stable_mosaic.version = 11 : i64} {
  func.func @_reduce_max_dim1_kernel(%arg0: i32, %arg1: i32, %arg2: memref<3x4x5xi8, #tpu.memory_space<vmem>>, %arg3: memref<3x5xi8, #tpu.memory_space<vmem>>, %arg4: memref<3x5xi32, #tpu.memory_space<vmem>>) attributes {dimension_semantics = [#tpu.dimension_semantics<parallel>, #tpu.dimension_semantics<parallel>], iteration_bounds = array<i64: 1, 1>, scalar_prefetch = 0 : i64, scratch_operands = 0 : i64, tpu.core_type = #tpu.core_type<tc>, window_params = [{transform_indices = @transform_0, window_bounds = array<i64: 3, 4, 5>}, {transform_indices = @transform_1, window_bounds = array<i64: 3, 5>}, {transform_indices = @transform_2, window_bounds = array<i64: 3, 5>}]} {
    %c0 = arith.constant 0 : index
    %c0_0 = arith.constant 0 : index
    %c0_1 = arith.constant 0 : index
    %0 = vector.load %arg2[%c0, %c0_0, %c0_1] : memref<3x4x5xi8, #tpu.memory_space<vmem>>, vector<3x4x5xi8>
    %1 = arith.extui %0 : vector<3x4x5xi8> to vector<3x4x5xi32>
    %2 = tpu.iota {dimensions = array<i32: 1>} : vector<3x4x5xi32>
    %c23_i32 = arith.constant 23 : i32
    %3 = vector.broadcast %c23_i32 : i32 to vector<3x4x5xi32>
    %4 = arith.shli %1, %3 : vector<3x4x5xi32>
    %c3_i32 = arith.constant 3 : i32
    %5 = vector.broadcast %c3_i32 : i32 to vector<3x4x5xi32>
    %6 = arith.subi %5, %2 : vector<3x4x5xi32>
    %7 = arith.ori %4, %6 : vector<3x4x5xi32>
    %cst = arith.constant dense<-2147483648> : vector<3x5xi32>
    %8 = vector.multi_reduction <maxsi>, %7, %cst [1] : vector<3x4x5xi32> to vector<3x5xi32>
    %c23_i32_2 = arith.constant 23 : i32
    %9 = vector.broadcast %c23_i32_2 : i32 to vector<3x5xi32>
    %10 = arith.shrsi %8, %9 : vector<3x5xi32>
    %11 = arith.trunci %10 : vector<3x5xi32> to vector<3x5xi8>
    %c0_3 = arith.constant 0 : index
    %c0_4 = arith.constant 0 : index
    %12 = vector.load %arg3[%c0_3, %c0_4] : memref<3x5xi8, #tpu.memory_space<vmem>>, vector<3x5xi8>
    tpu.vector_store %arg3[%c0_3, %c0_4], %11 {strides = array<i32>} : memref<3x5xi8, #tpu.memory_space<vmem>>, vector<3x5xi8>,
    %c8388607_i32 = arith.constant 8388607 : i32
    %13 = vector.broadcast %c8388607_i32 : i32 to vector<3x5xi32>
    %14 = arith.andi %8, %13 : vector<3x5xi32>
    %c3_i32_5 = arith.constant 3 : i32
    %15 = vector.broadcast %c3_i32_5 : i32 to vector<3x5xi32>
    %16 = arith.subi %15, %14 : vector<3x5xi32>
    %c0_6 = arith.constant 0 : index
    %c0_7 = arith.constant 0 : index
    %17 = vector.load %arg4[%c0_6, %c0_7] : memref<3x5xi32, #tpu.memory_space<vmem>>, vector<3x5xi32>
    tpu.vector_store %arg4[%c0_6, %c0_7], %16 {strides = array<i32>} : memref<3x5xi32, #tpu.memory_space<vmem>>, vector<3x5xi32>,
    return
  }
  func.func @transform_0(%arg0: i32, %arg1: i32) -> (i32, i32, i32) {
    %c0_i32 = arith.constant 0 : i32
    %c0_i32_0 = arith.constant 0 : i32
    return %arg0, %c0_i32, %arg1 : i32, i32, i32
  }
  func.func @transform_1(%arg0: i32, %arg1: i32) -> (i32, i32) {
    %c0_i32 = arith.constant 0 : i32
    return %arg0, %arg1 : i32, i32
  }
  func.func @transform_2(%arg0: i32, %arg1: i32) -> (i32, i32) {
    %c0_i32 = arith.constant 0 : i32
    return %arg0, %arg1 : i32, i32
  }
}

</mosaic_0001>

<llo_original>
// kernel: tpu_custom_call.1
$region0: #{tpu_custom_call.1}
  #allocation0 [shape = 'u32[]', space=smem, size = 0x4, offset = 0x4, fixed_abs, tag = 'smem constant byte address 0x4 - core index']
  #allocation1 [shape = 'u32[72,128]{1,0:T(1,128)}', space=vmem, size = 0x9000, scoped, tag = 'internal scratch']
  %s0 = inlined_call_operand.hbm [shape: u8[3,4,5], index: 0, kind: input, shape index: {}]
  %s1 = inlined_call_operand.hbm [shape: u8[3,5], index: 1, kind: output, shape index: {0}]
  %s2 = inlined_call_operand.hbm [shape: s32[3,5], index: 2, kind: output, shape index: {1}]
  %3 = xla_tuple %s1, %s2
  %s4 = sld [smem:[#allocation0]]
  $region26: #{tpu_custom_call.1} parent=0
    _
  %s6 = ssub.s32 1, %s4
  %s7 = scalar_select 0, %s6, %s4
  $region1: #{tpu_custom_call.1} parent=0
    #allocation2 [shape = 'u8[1536]{0}', space=vmem, size = 0x800, scoped, tag = 'input window, operand 0, single buffered']
    #allocation3 [shape = 's32[1]{0}', space=sflag, size = 0x4, scoped, tag = 'scoped memory for tpu_custom_call.1']
    #allocation4 [shape = 's32[1]{0}', space=sflag, size = 0x4, scoped, tag = 'scoped memory for tpu_custom_call.1']
    #allocation5 [shape = 'u8[512]{0}', space=vmem, size = 0x400, scoped, tag = 'output window, operand 0, single buffered']
    #allocation6 [shape = 'u8[2048]{0}', space=vmem, size = 0x800, scoped, tag = 'output window, operand 1, single buffered']
    #allocation7 [shape = 's32[1]{0}', space=sflag, size = 0x4, scoped, tag = 'scoped memory for tpu_custom_call.1']
    %8 = vsyncpa [#allocation3], 0
    %9 = vsyncpa [#allocation4], 0
    %10 = vsyncpa [#allocation7], 0
    // Predicated region
    $region2: #{tpu_custom_call.1} parent=1 // pred_check
      _
    $region3: #{tpu_custom_call.1} parent=1 // pred_check_branch
      %12 = sbr.rel (0) target = $region5
    $region4: #{tpu_custom_call.1} parent=1 // pred_region
      %14 = vsyncadd [#allocation3], 0
      %s15 = sshll.u32 %s0, 4
      %s16 = int_to_ptr.hbm [resolvable:$true] %s15
      %s17 = sshll.u32 [#allocation2], 4
      %s18 = int_to_ptr.vmem [resolvable:$true] %s17
      %23 = dma.hbm_to_vmem [thread:$0]  %s16, 48, %s18, [#allocation3], 16, 16, 1
    $region5: #{tpu_custom_call.1} parent=1 // pred_fallthru
      _
    // Predicated region
    $region6: #{tpu_custom_call.1} parent=1 // pred_check
      _
    $region7: #{tpu_custom_call.1} parent=1 // pred_check_branch
      %25 = sbr.rel (0) target = $region9
    $region8: #{tpu_custom_call.1} parent=1 // pred_region
      %27 = dma.done [#allocation3], 48
    $region9: #{tpu_custom_call.1} parent=1 // pred_fallthru
      _
    %v28 = vld [vmem:[#allocation2] sm:$0x1]
    %v29 = vld [vmem:[#allocation2 + $0x1] sm:$0x1]
    %v30 = vld [vmem:[#allocation2 + $0x2] sm:$0x1]
    %v31 = vunpack.c.0.s8 %v28
    %v32 = vunpack.c.0.s8 %v29
    %v33 = vunpack.c.0.s8 %v30
    %v34 = vand.u32 %v31, 255
    %v35 = vand.u32 %v32, 255
    %v36 = vand.u32 %v33, 255
    %v37 = vlaneseq
    %v38 = vshrl.u32 %v37, 7
    %v39 = vshll.u32 %v34, 23
    %v40 = vshll.u32 %v35, 23
    %v41 = vshll.u32 %v36, 23
    %v42 = vsub.s32 3, %v38
    %v43 = vor.u32 %v39, %v42
    %v44 = vor.u32 %v40, %v42
    %v45 = vor.u32 %v41, %v42
    %vm46 = vcmask 35840
    %v47 = vsel %vm46, %v43, 2147483648
    %v48 = vrot.slane %v47, 4
    %vm49 = vcmp.gt.s32.totalorder %v47, %v48
    %v50 = vsel %vm49, %v47, %v48
    %v51 = vrot.slane %v50, 2
    %vm52 = vcmp.gt.s32.totalorder %v50, %v51
    %v53 = vsel %vm52, %v50, %v51
    %v54 = vrot.slane %v53, 1
    %vm55 = vcmp.gt.s32.totalorder %v53, %v54
    %v56 = vsel %vm55, %v53, %v54
    %v57 = vsel %vm46, %v44, 2147483648
    %v58 = vrot.slane %v57, 4
    %vm59 = vcmp.gt.s32.totalorder %v57, %v58
    %v60 = vsel %vm59, %v57, %v58
    %v61 = vrot.slane %v60, 2
    %vm62 = vcmp.gt.s32.totalorder %v60, %v61
    %v63 = vsel %vm62, %v60, %v61
    %v64 = vrot.slane %v63, 1
    %vm65 = vcmp.gt.s32.totalorder %v63, %v64
    %v66 = vsel %vm65, %v63, %v64
    %v67 = vsel %vm46, %v45, 2147483648
    %v68 = vrot.slane %v67, 4
    %vm69 = vcmp.gt.s32.totalorder %v67, %v68
    %v70 = vsel %vm69, %v67, %v68
    %v71 = vrot.slane %v70, 2
    %vm72 = vcmp.gt.s32.totalorder %v70, %v71
    %v73 = vsel %vm72, %v70, %v71
    %v74 = vrot.slane %v73, 1
    %vm75 = vcmp.gt.s32.totalorder %v73, %v74
    %v76 = vsel %vm75, %v73, %v74
    %v77 = vshra.s32 %v56, 23
    %v78 = vshra.s32 %v66, 23
    %v79 = vshra.s32 %v76, 23
    %v80 = vpack.c.b16 %v77, %v77
    %v81 = vpack.c.b8 %v80, %v80
    %v82 = vpack.c.b16 %v78, %v78
    %v83 = vpack.c.b8 %v82, %v82
    %v84 = vpack.c.b16 %v79, %v79
    %v85 = vpack.c.b8 %v84, %v84
    %87 = vst [vmem:[#allocation1] ss:$2 sm:$0xff] %v81
    %v88 = vld [vmem:[#allocation1] sm:$0xff]
    %s91 = scalar_lea.vmem [#allocation1], 16
    %92 = vst [vmem:[%s91] ss:$2 sm:$0xff] %v83
    %v93 = vld [vmem:[#allocation1 + $0x10] sm:$0xff]
    %s96 = scalar_lea.vmem [#allocation1], 32
    %97 = vst [vmem:[%s96] ss:$2 sm:$0xff] %v85
    %v98 = vld [vmem:[#allocation1 + $0x20] sm:$0xff]
    %v100 = vunpack.c.0.s8 %v88
    %v101 = vunpack.c.0.s8 %v93
    %v102 = vunpack.c.0.s8 %v98
    %v103 = vrot.slane %v101, 7
    %vm104 = vcmask 1041409
    %v105 = vsel %vm104, %v103, %v100
    %v106 = vrot.slane %v102, 6
    %vm107 = vcmask 1042434
    %v108 = vsel %vm107, %v106, %v105
    %v109 = vpack.c.b16 %v108, %v108
    %v110 = vpack.c.b8 %v109, %v109
    %v111 = vrot.slane %v110, 1
    %v112 = vrot.slane %v110, 2
    %v113 = vrot.slane %v110, 3
    %vm114 = vcmask 1040384
    %v117 = vsel %vm114, %v110, %v111
    %v120 = vsel %vm107, %v112, %v113
    %vm121 = vcmask 1041408
    %v122 = vsel %vm121, %v117, %v120
    %vm124 = vcmask 32768
    %vm125 = vsmask.f32 512
    %vm126 = vmand %vm124, %vm125
    %v127 = vld [vmem:[#allocation5] sm:$0x1]
    %v128 = vsel %vm126, %v122, %v127
    %129 = vst [vmem:[#allocation5] sm:$0x1] %v128
    %v130 = vand.u32 %v56, 8388607
    %v131 = vand.u32 %v66, 8388607
    %v132 = vand.u32 %v76, 8388607
    %v133 = vsub.s32 3, %v130
    %v134 = vsub.s32 3, %v131
    %v135 = vsub.s32 3, %v132
    %v136 = vsel %vm104, %v134, %v133
    %v137 = vsel %vm107, %v135, %v136
    %vm138 = vcmask 34816
    %139 = vst.msk [vmem:[#allocation6] sm:$0x7] %vm138, %v137
    // Predicated region
    $region10: #{tpu_custom_call.1} parent=1 // pred_check
      _
    $region11: #{tpu_custom_call.1} parent=1 // pred_check_branch
      %141 = sbr.rel (0) target = $region13
    $region12: #{tpu_custom_call.1} parent=1 // pred_region
      %143 = vsyncadd [#allocation4], 0
      %s145 = sshll.u32 [#allocation5], 4
      %s146 = int_to_ptr.vmem [resolvable:$true] %s145
      %s147 = sshll.u32 %s1, 4
      %s148 = int_to_ptr.hbm [resolvable:$true] %s147
      %150 = dma.vmem_to_hbm [thread:$0]  %s146, 16, %s148, [#allocation4]
    $region13: #{tpu_custom_call.1} parent=1 // pred_fallthru
      _
    // Predicated region
    $region14: #{tpu_custom_call.1} parent=1 // pred_check
      _
    $region15: #{tpu_custom_call.1} parent=1 // pred_check_branch
      %152 = sbr.rel (0) target = $region17
    $region16: #{tpu_custom_call.1} parent=1 // pred_region
      %154 = vsyncadd [#allocation7], 0
      %s156 = sshll.u32 [#allocation6], 4
      %s157 = int_to_ptr.vmem [resolvable:$true] %s156
      %s158 = sshll.u32 %s2, 4
      %s159 = int_to_ptr.hbm [resolvable:$true] %s158
      %161 = dma.vmem_to_hbm [thread:$0]  %s157, 64, %s159, [#allocation7]
    $region17: #{tpu_custom_call.1} parent=1 // pred_fallthru
      _
    // Predicated region
    $region18: #{tpu_custom_call.1} parent=1 // pred_check
      _
    $region19: #{tpu_custom_call.1} parent=1 // pred_check_branch
      %163 = sbr.rel (0) target = $region21
    $region20: #{tpu_custom_call.1} parent=1 // pred_region
      %165 = dma.done [#allocation4], 16
    $region21: #{tpu_custom_call.1} parent=1 // pred_fallthru
      _
    // Predicated region
    $region22: #{tpu_custom_call.1} parent=1 // pred_check
      _
    $region23: #{tpu_custom_call.1} parent=1 // pred_check_branch
      %167 = sbr.rel (0) target = $region25
    $region24: #{tpu_custom_call.1} parent=1 // pred_region
      %169 = dma.done [#allocation7], 64
    $region25: #{tpu_custom_call.1} parent=1 // pred_fallthru
      _
    %170 = vsyncpa [#allocation3], 1
    %171 = vsyncpa [#allocation4], 1
    %172 = vsyncpa [#allocation7], 1

</llo_original>
